<compile_context>
chip_gen: v6e
topology: v6e:2x2x1
jax: 0.10.0
libtpu: 0.0.40
codegen_flags: <defaults>
</compile_context>

<pallas_src>
import functools

import jax
import jax.numpy as jnp
from jax.experimental import pallas as pl
from jax.experimental.pallas import tpu as pltpu


def _round_up(x, m):
    return ((x + m - 1) // m) * m


def _vmem_capacity_bytes():
    """Physical per-TensorCore VMEM (generation aware); conservative fallback."""
    try:
        info = pltpu.get_tpu_info()
        cap = getattr(info, "vmem_capacity_bytes", None)
        if cap:
            return int(cap)
    except Exception:
        pass
    return 64 * 1024 * 1024  # v7x per-TC VMEM (smallest of current generations)


# ---------------------------------------------------------------------------
# Fused single-pass kernel: one HBM read + one HBM write of x.
# ---------------------------------------------------------------------------
def _se_fused_kernel(x_ref, w1t_ref, w2_ref, o_ref, *, inv_hw):
    # x_ref  : (Bblk, C, HW) input slab for Bblk batch elements
    # w1t_ref: (C, Hd)       fc1.weight.T   (fc1: C -> Hd, no bias)
    # w2_ref : (C, Hd)       fc2.weight     (fc2: Hd -> C, no bias)
    # o_ref  : (Bblk, C, HW)

    # --- squeeze: fp32-accumulated spatial sum directly from the input ref ---
    # (no fp32 copy of the slab is kept alive until the store)
    m = jnp.sum(x_ref[...], axis=-1, dtype=jnp.float32) * inv_hw          # (B, C)

    # --- excite: two tiny bias-free linears on the VPU/XLU (NOT the MXU) ---
    h = jnp.sum(w1t_ref[...][None, :, :] * m[:, :, None], axis=1)         # (B, Hd)
    h = jnp.maximum(h, 0.0)                                               # ReLU
    s = jnp.sum(w2_ref[...][None, :, :] * h[:, None, :], axis=-1)         # (B, C)
    s = 1.0 / (1.0 + jnp.exp(-s))                                         # Sigmoid

    # --- scale: re-read x_ref, multiply by the gate cast to the input dtype ---
    o_ref[...] = x_ref[...] * s[:, :, None].astype(o_ref.dtype)


def _se_fused(x3, w1t, w2f, *, donate_x=False):
    """Returns the fused result, or None if the slab cannot fit VMEM."""
    N, C, HW = x3.shape
    hidden = w1t.shape[1]
    itemsize = x3.dtype.itemsize

    # --- padded-VMEM-layout accounting (128 lanes, 8/16/32 sublane packing) ---
    sub = 8 * max(1, 4 // itemsize)
    per_batch = _round_up(C, sub) * _round_up(HW, 128) * itemsize
    w_bytes = 2 * 2 * _round_up(C, 8) * _round_up(hidden, 128) * 4

    def need_bytes(b):
        temps = 3 * b * _round_up(C, 8) * 128 * 4      # small in-kernel fp32 temps
        # input + output blocks, double-buffered, + weights + temps + slack
        return 4 * b * per_batch + w_bytes + temps + (1 << 20)

    budget = int(0.70 * _vmem_capacity_bytes())
    if need_bytes(1) > budget:
        return None  # caller falls back to the HW-tiled two-pass variant

    # --- batch blocking: grow the block toward ~1-4 MiB DMAs ----------------
    max_b = N if N == 1 else max(1, N // 2)   # keep >= 2 grid steps for megacore
    bblk = 1
    for b in range(1, max_b + 1):
        if N % b:
            continue
        if need_bytes(b) > budget:
            break
        bblk = b
        if b * per_batch >= (4 << 20):
            break

    vmem_limit = int(min(budget, max(need_bytes(bblk) * 3 // 2, 32 << 20)))

    cost = pl.CostEstimate(
        flops=2 * N * C * HW + 4 * N * C * hidden,
        transcendentals=N * C,
        bytes_accessed=2 * N * C * HW * itemsize + 2 * C * hidden * 4,
    )

    kernel = functools.partial(_se_fused_kernel, inv_hw=float(1.0 / HW))
    extra = {"input_output_aliases": {0: 0}} if donate_x else {}
    return pl.pallas_call(
        kernel,
        out_shape=jax.ShapeDtypeStruct((N, C, HW), x3.dtype),
        grid_spec=pltpu.PrefetchScalarGridSpec(
            num_scalar_prefetch=0,
            grid=(N // bblk,),
            in_specs=[
                pl.BlockSpec((bblk, C, HW), lambda i: (i, 0, 0)),
                pl.BlockSpec((C, hidden), lambda i: (0, 0)),
                pl.BlockSpec((C, hidden), lambda i: (0, 0)),
            ],
            out_specs=pl.BlockSpec((bblk, C, HW), lambda i: (i, 0, 0)),
        ),
        compiler_params=pltpu.CompilerParams(
            dimension_semantics=("parallel",),
            vmem_limit_bytes=vmem_limit,
        ),
        cost_estimate=cost,
        **extra,
    )(x3, w1t, w2f)


# ---------------------------------------------------------------------------
# Fallback for slabs that exceed VMEM: HW-tiled two-pass variant.
# ---------------------------------------------------------------------------
def _se_sum_kernel(x_ref, sum_ref, *, hw_total, hw_tile):
    # x_ref: (1, C, HWT); sum_ref: (1, 1, C) fp32, resident across the HW axis.
    t = pl.program_id(1)
    xb = x_ref[0].astype(jnp.float32)                              # (C, HWT)
    lane = jax.lax.broadcasted_iota(jnp.int32, xb.shape, 1)
    valid = hw_total - t * hw_tile                                 # mask padded tail
    part = jnp.sum(jnp.where(lane < valid, xb, 0.0), axis=-1)[None, :]   # (1, C)

    @pl.when(t == 0)
    def _():
        sum_ref[0] = part

    @pl.when(t != 0)
    def _():
        sum_ref[0] = sum_ref[0] + part


def _se_scale_kernel(x_ref, s_ref, o_ref):
    # x_ref: (1, C, HWT); s_ref: (1, C, 1); o_ref: (1, C, HWT)
    o_ref[...] = x_ref[...] * s_ref[...].astype(o_ref.dtype)


def _se_two_pass(x3, w1, w2, *, hw_tile=None):
    N, C, HW = x3.shape
    itemsize = x3.dtype.itemsize
    budget = int(0.70 * _vmem_capacity_bytes())

    if hw_tile is None:
        sub = 8 * max(1, 4 // itemsize)
        cp = _round_up(C, sub)
        max_hwp = max(128, (budget - (2 << 20)) // (4 * cp * itemsize))
        max_hwp = max(128, (max_hwp // 128) * 128)
        hw_tile = HW if HW <= max_hwp else min(max_hwp, 4096)
    n_t = pl.cdiv(HW, hw_tile)

    # Pass 1: per-(b, c) spatial sums accumulated over HW tiles in fp32.
    sums = pl.pallas_call(
        functools.partial(_se_sum_kernel, hw_total=HW, hw_tile=hw_tile),
        out_shape=jax.ShapeDtypeStruct((N, 1, C), jnp.float32),
        grid_spec=pltpu.PrefetchScalarGridSpec(
            num_scalar_prefetch=0,
            grid=(N, n_t),
            in_specs=[pl.BlockSpec((1, C, hw_tile), lambda b, t: (b, 0, t))],
            out_specs=pl.BlockSpec((1, 1, C), lambda b, t: (b, 0, 0)),
        ),
        compiler_params=pltpu.CompilerParams(
            dimension_semantics=("parallel", "arbitrary"),
            vmem_limit_bytes=budget,
        ),
    )(x3)

    # Gate: the two (N, C)-sized mat-vecs + sigmoid are negligible next to the
    # two HBM passes over x, so they run as plain fused XLA ops between passes.
    mean = sums.reshape(N, C) / HW
    h = jnp.maximum(mean @ jnp.asarray(w1, jnp.float32).T, 0.0)
    s = (1.0 / (1.0 + jnp.exp(-(h @ jnp.asarray(w2, jnp.float32).T)))).reshape(N, C, 1)

    # Pass 2: tile-wise rescale of x by the per-channel gate.
    return pl.pallas_call(
        _se_scale_kernel,
        out_shape=jax.ShapeDtypeStruct((N, C, HW), x3.dtype),
        grid_spec=pltpu.PrefetchScalarGridSpec(
            num_scalar_prefetch=0,
            grid=(N, n_t),
            in_specs=[
                pl.BlockSpec((1, C, hw_tile), lambda b, t: (b, 0, t)),
                pl.BlockSpec((1, C, 1), lambda b, t: (b, 0, 0)),
            ],
            out_specs=pl.BlockSpec((1, C, hw_tile), lambda b, t: (b, 0, t)),
        ),
        compiler_params=pltpu.CompilerParams(
            dimension_semantics=("parallel", "parallel"),
            vmem_limit_bytes=budget,
        ),
    )(x3, s)


# ---------------------------------------------------------------------------
# Public wrapper: SELayerPolicy.forward(x, _)
# ---------------------------------------------------------------------------
def se_layer_policy(x, _unused, w1, w2, *, force_two_pass=False,
                    two_pass_hw_tile=None, donate_x=False):
    """Pallas implementation of SELayerPolicy.forward(x, _).

    x  : (N, C, H, W)
    w1 : (C // r, C)   fc[0].weight (bias=False)
    w2 : (C, C // r)   fc[2].weight (bias=False)
    """
    del _unused  # the reference forward ignores its second argument
    N, C, H, W = x.shape
    HW = H * W

    x3 = x.reshape(N, C, HW)
    w1t = jnp.asarray(w1, jnp.float32).T     # (C, hidden)
    w2f = jnp.asarray(w2, jnp.float32)       # (C, hidden)

    out3 = None
    if not force_two_pass:
        out3 = _se_fused(x3, w1t, w2f, donate_x=donate_x)
    if out3 is None:
        out3 = _se_two_pass(x3, w1, w2, hw_tile=two_pass_hw_tile)
    return out3.reshape(N, C, H, W)


if __name__ == "__main__":
    key = jax.random.PRNGKey(0)
    kx, kx2, k1, k2 = jax.random.split(key, 4)

    def reference(x, w1, w2):
        y = x.mean(axis=(2, 3))                      # (N, C)
        h = jnp.maximum(y @ w1.T, 0.0)               # fc1 + ReLU
        s = jax.nn.sigmoid(h @ w2.T)                 # fc2 + Sigmoid
        return x * s[:, :, None, None]

    N, C, reduction = 2, 32, 16
    hidden = C // reduction  # = 2
    # nn.Linear(C, hidden, bias=False).weight -> (hidden, C)
    w1 = jax.random.normal(k1, (hidden, C), jnp.float32) * (1.0 / jnp.sqrt(C))
    # nn.Linear(hidden, C, bias=False).weight -> (C, hidden)
    w2 = jax.random.normal(k2, (C, hidden), jnp.float32) * (1.0 / jnp.sqrt(hidden))

    # Case 1: lane-dense spatial size (16x16 -> HW=256), fused single-pass path.
    x = jax.random.normal(kx, (N, C, 16, 16), dtype=jnp.float32)
    dummy = jnp.zeros_like(x)  # ignored second argument of forward()
    out = jax.block_until_ready(se_layer_policy(x, dummy, w1, w2))
    ref = reference(x, w1, w2)
    assert out.shape == x.shape
    err = float(jnp.max(jnp.abs(out - ref)))
    assert jnp.allclose(out, ref, atol=1e-5, rtol=1e-5), "fused max abs err = %g" % err

    # Case 2: HW not a multiple of 128 (14x14 -> HW=196), forced HW-tiled
    # two-pass fallback with a partial tail tile (exercises the masked tail
    # reads/stores and the cross-tile accumulation).
    x2 = jax.random.normal(kx2, (N, C, 14, 14), dtype=jnp.float32)
    out2 = jax.block_until_ready(
        se_layer_policy(x2, dummy, w1, w2, force_two_pass=True, two_pass_hw_tile=128))
    ref2 = reference(x2, w1, w2)
    err2 = float(jnp.max(jnp.abs(out2 - ref2)))
    assert jnp.allclose(out2, ref2, atol=1e-5, rtol=1e-5), "two-pass max abs err = %g" % err2

    print("KERNEL_OK")
</pallas_src>

<mosaic_0001>
module attributes {stable_mosaic.version = 11 : i64} {
  func.func @_se_fused_kernel(%arg0: i32, %arg1: memref<1x32x256xf32, #tpu.memory_space<vmem>>, %arg2: memref<32x2xf32, #tpu.memory_space<vmem>>, %arg3: memref<32x2xf32, #tpu.memory_space<vmem>>, %arg4: memref<1x32x256xf32, #tpu.memory_space<vmem>>) attributes {dimension_semantics = [#tpu.dimension_semantics<parallel>], iteration_bounds = array<i64: 2>, scalar_prefetch = 0 : i64, scratch_operands = 0 : i64, tpu.core_type = #tpu.core_type<tc>, window_params = [{transform_indices = @transform_0, window_bounds = array<i64: 1, 32, 256>}, {pipeline_mode = #tpu.pipeline_mode<synchronous>, transform_indices = @transform_1, window_bounds = array<i64: 32, 2>}, {pipeline_mode = #tpu.pipeline_mode<synchronous>, transform_indices = @transform_2, window_bounds = array<i64: 32, 2>}, {transform_indices = @transform_3, window_bounds = array<i64: 1, 32, 256>}]} {
    %c0 = arith.constant 0 : index
    %c0_0 = arith.constant 0 : index
    %c0_1 = arith.constant 0 : index
    %0 = vector.load %arg1[%c0, %c0_0, %c0_1] : memref<1x32x256xf32, #tpu.memory_space<vmem>>, vector<1x32x256xf32>
    %cst = arith.constant dense<0.000000e+00> : vector<1x32xf32>
    %1 = vector.multi_reduction <add>, %0, %cst [2] : vector<1x32x256xf32> to vector<1x32xf32>
    %cst_2 = arith.constant 3.906250e-03 : f32
    %2 = vector.broadcast %cst_2 : f32 to vector<1x32xf32>
    %3 = arith.mulf %1, %2 : vector<1x32xf32>
    %c0_3 = arith.constant 0 : index
    %c0_4 = arith.constant 0 : index
    %4 = vector.load %arg2[%c0_3, %c0_4] : memref<32x2xf32, #tpu.memory_space<vmem>>, vector<32x2xf32>
    %5 = vector.shape_cast %4 : vector<32x2xf32> to vector<1x32x2xf32>
    %6 = vector.shape_cast %3 : vector<1x32xf32> to vector<1x32x1xf32>
    %7 = vector.broadcast %6 : vector<1x32x1xf32> to vector<1x32x2xf32>
    %8 = arith.mulf %5, %7 : vector<1x32x2xf32>
    %cst_5 = arith.constant dense<0.000000e+00> : vector<1x2xf32>
    %9 = vector.multi_reduction <add>, %8, %cst_5 [1] : vector<1x32x2xf32> to vector<1x2xf32>
    %cst_6 = arith.constant 0.000000e+00 : f32
    %10 = vector.broadcast %cst_6 : f32 to vector<1x2xf32>
    %11 = arith.maximumf %9, %10 : vector<1x2xf32>
    %c0_7 = arith.constant 0 : index
    %c0_8 = arith.constant 0 : index
    %12 = vector.load %arg3[%c0_7, %c0_8] : memref<32x2xf32, #tpu.memory_space<vmem>>, vector<32x2xf32>
    %13 = vector.shape_cast %12 : vector<32x2xf32> to vector<1x32x2xf32>
    %14 = vector.shape_cast %11 : vector<1x2xf32> to vector<1x1x2xf32>
    %15 = vector.broadcast %14 : vector<1x1x2xf32> to vector<1x32x2xf32>
    %16 = arith.mulf %13, %15 : vector<1x32x2xf32>
    %cst_9 = arith.constant dense<0.000000e+00> : vector<1x32xf32>
    %17 = vector.multi_reduction <add>, %16, %cst_9 [2] : vector<1x32x2xf32> to vector<1x32xf32>
    %cst_10 = arith.constant 0.000000e+00 : f32
    %18 = vector.broadcast %cst_10 : f32 to vector<1x32xf32>
    %19 = arith.subf %18, %17 : vector<1x32xf32>
    %20 = math.exp %19 : vector<1x32xf32>
    %cst_11 = arith.constant 1.000000e+00 : f32
    %21 = vector.broadcast %cst_11 : f32 to vector<1x32xf32>
    %22 = arith.addf %21, %20 : vector<1x32xf32>
    %cst_12 = arith.constant 1.000000e+00 : f32
    %23 = vector.broadcast %cst_12 : f32 to vector<1x32xf32>
    %24 = arith.divf %23, %22 : vector<1x32xf32>
    %c0_13 = arith.constant 0 : index
    %c0_14 = arith.constant 0 : index
    %c0_15 = arith.constant 0 : index
    %25 = vector.load %arg1[%c0_13, %c0_14, %c0_15] : memref<1x32x256xf32, #tpu.memory_space<vmem>>, vector<1x32x256xf32>
    %26 = vector.shape_cast %24 : vector<1x32xf32> to vector<1x32x1xf32>
    %27 = vector.broadcast %26 : vector<1x32x1xf32> to vector<1x32x256xf32>
    %28 = arith.mulf %25, %27 : vector<1x32x256xf32>
    %c0_16 = arith.constant 0 : index
    %c0_17 = arith.constant 0 : index
    %c0_18 = arith.constant 0 : index
    %29 = vector.load %arg4[%c0_16, %c0_17, %c0_18] : memref<1x32x256xf32, #tpu.memory_space<vmem>>, vector<1x32x256xf32>
    tpu.vector_store %arg4[%c0_16, %c0_17, %c0_18], %28 {strides = array<i32>} : memref<1x32x256xf32, #tpu.memory_space<vmem>>, vector<1x32x256xf32>,
    return
  }
  func.func @transform_0(%arg0: i32) -> (i32, i32, i32) {
    %c0_i32 = arith.constant 0 : i32
    %c0_i32_0 = arith.constant 0 : i32
    %c0_i32_1 = arith.constant 0 : i32
    return %arg0, %c0_i32, %c0_i32_0 : i32, i32, i32
  }
  func.func @transform_1(%arg0: i32) -> (i32, i32) {
    %c0_i32 = arith.constant 0 : i32
    %c0_i32_0 = arith.constant 0 : i32
    %c0_i32_1 = arith.constant 0 : i32
    return %c0_i32, %c0_i32_0 : i32, i32
  }
  func.func @transform_2(%arg0: i32) -> (i32, i32) {
    %c0_i32 = arith.constant 0 : i32
    %c0_i32_0 = arith.constant 0 : i32
    %c0_i32_1 = arith.constant 0 : i32
    return %c0_i32, %c0_i32_0 : i32, i32
  }
  func.func @transform_3(%arg0: i32) -> (i32, i32, i32) {
    %c0_i32 = arith.constant 0 : i32
    %c0_i32_0 = arith.constant 0 : i32
    %c0_i32_1 = arith.constant 0 : i32
    return %arg0, %c0_i32, %c0_i32_0 : i32, i32, i32
  }
}

</mosaic_0001>

<llo_original>
// kernel: tpu_custom_call.1
$region0: #{tpu_custom_call.1}
  #allocation0 [shape = 'u32[]', space=smem, size = 0x4, offset = 0x4, fixed_abs, tag = 'smem constant byte address 0x4 - core index']
  #allocation1 [shape = 'u32[144,128]{1,0:T(1,128)}', space=vmem, size = 0x12000, scoped, tag = 'internal scratch']
  %s0 = inlined_call_operand.hbm [shape: f32[2,32,256], index: 0, kind: input, shape index: {}]
  %s1 = inlined_call_operand.vmem [shape: f32[32,2], index: 1, kind: input, shape index: {}]
  %s2 = inlined_call_operand.vmem [shape: f32[32,2], index: 2, kind: input, shape index: {}]
  %s3 = inlined_call_operand.hbm [shape: f32[2,32,256], index: 3, kind: output, shape index: {}]
  %s4 = sld [smem:[#allocation0]]
  $region49: #{tpu_custom_call.1} parent=0
    _
  %s6 = ssub.s32 1, %s4
  %s7 = scalar_select 0, %s6, %s4
  $region1: #{tpu_custom_call.1} parent=0
    #allocation2 [shape = 'u8[65536]{0}', space=vmem, size = 0x10000, scoped, tag = 'input window, operand 0']
    #allocation3 [shape = 's32[2]{0}', space=sflag, size = 0x8, scoped, tag = 'scoped memory for tpu_custom_call.1']
    #allocation4 [shape = 's32[2]{0}', space=sflag, size = 0x8, scoped, tag = 'scoped memory for tpu_custom_call.1']
    #allocation5 [shape = 'u8[65536]{0}', space=vmem, size = 0x10000, scoped, tag = 'output window, operand 0']
    %8 = vsyncpa [#allocation3], 0
    %s9 = scalar_lea.sflag [#allocation3], 1
    %10 = vsyncpa %s9, 0
    %11 = vsyncpa [#allocation4], 0
    %s12 = scalar_lea.sflag [#allocation4], 1
    %13 = vsyncpa %s12, 0
    loop: start=0, step=1, limit=4
    $region2: #{tpu_custom_call.1} parent=1 // loop_pre_header
      _
    $region3: #{tpu_custom_call.1} parent=1 // loop_header
      %s15 = sphi 0, %s19
      %p16 = scmp.ge.s32.totalorder %s15, 4
      %s25 = sphi 0, %s27
      %s28 = sphi 0, %s25
      %s29 = sphi 0, %s28
      %s45 = sphi 0, %s29
      %s49 = sphi 0, %s49
      %s51 = sphi 0, %s49
      %s52 = sphi 0, %s51
      %s66 = sphi 0, %s52
      %s70 = sphi 0, %s70
      %s72 = sphi 0, %s70
      %s73 = sphi 0, %s72
      %s87 = sphi 0, %s73
      %s93 = sphi 0, %s95
      %s96 = sphi 0, %s93
      %s97 = sphi 0, %s96
      %s113 = sphi 0, %s97
    $region4: #{tpu_custom_call.1} parent=1 // loop_header_branch
      %18 = sbr.rel (%p16) target = $region8
    $region5: #{tpu_custom_call.1} parent=1 // loop_body
      %s20 = ssub.s32 %s15, 1
      %s21 = ssub.s32 %s15, 2
      %s22 = sadd.s32 %s15, 1
      %s23 = ssub.s32 %s15, %s22
      %p24 = scmp.eq.s32.totalorder %s23, 0
      %s26 = sadd.s32 %s25, 1
      %s27 = scalar_select %p24, %s25, %s26
      %p30 = pneg %p24
      %p31 = scmp.eq.s32.totalorder %s15, 1
      %p32 = por %p30, %p31
      %p33 = scmp.ne.s32.totalorder %s25, %s28
      %p34 = scmp.eq.s32.totalorder %s15, 0
      %p35 = por %p33, %p34
      %p36 = scmp.ne.s32.totalorder %s25, %s28
      %p37 = scmp.eq.s32.totalorder %s20, 1
      %p38 = por %p36, %p37
      %p39 = scmp.ne.s32.totalorder %s28, %s29
      %p40 = scmp.eq.s32.totalorder %s20, 0
      %p41 = por %p39, %p40
      %p42 = scmp.ne.s32.totalorder %s28, %s29
      %p43 = scmp.eq.s32.totalorder %s21, 1
      %p44 = por %p42, %p43
      %p46 = scmp.ne.s32.totalorder %s29, %s45
      %p47 = scmp.eq.s32.totalorder %s21, 0
      %p48 = por %p46, %p47
      %s50 = sadd.s32 %s49, 1
      %p53 = scmp.eq.s32.totalorder %s15, 1
      %p54 = scmp.ne.s32.totalorder %s49, %s51
      %p55 = scmp.eq.s32.totalorder %s15, 0
      %p56 = por %p54, %p55
      %p57 = scmp.ne.s32.totalorder %s49, %s51
      %p58 = scmp.eq.s32.totalorder %s20, 1
      %p59 = por %p57, %p58
      %p60 = scmp.ne.s32.totalorder %s51, %s52
      %p61 = scmp.eq.s32.totalorder %s20, 0
      %p62 = por %p60, %p61
      %p63 = scmp.ne.s32.totalorder %s51, %s52
      %p64 = scmp.eq.s32.totalorder %s21, 1
      %p65 = por %p63, %p64
      %p67 = scmp.ne.s32.totalorder %s52, %s66
      %p68 = scmp.eq.s32.totalorder %s21, 0
      %p69 = por %p67, %p68
      %s71 = sadd.s32 %s70, 1
      %p74 = scmp.eq.s32.totalorder %s15, 1
      %p75 = scmp.ne.s32.totalorder %s70, %s72
      %p76 = scmp.eq.s32.totalorder %s15, 0
      %p77 = por %p75, %p76
      %p78 = scmp.ne.s32.totalorder %s70, %s72
      %p79 = scmp.eq.s32.totalorder %s20, 1
      %p80 = por %p78, %p79
      %p81 = scmp.ne.s32.totalorder %s72, %s73
      %p82 = scmp.eq.s32.totalorder %s20, 0
      %p83 = por %p81, %p82
      %p84 = scmp.ne.s32.totalorder %s72, %s73
      %p85 = scmp.eq.s32.totalorder %s21, 1
      %p86 = por %p84, %p85
      %p88 = scmp.ne.s32.totalorder %s73, %s87
      %p89 = scmp.eq.s32.totalorder %s21, 0
      %p90 = por %p88, %p89
      %s91 = ssub.s32 %s15, %s22
      %p92 = scmp.eq.s32.totalorder %s91, 0
      %s94 = sadd.s32 %s93, 1
      %s95 = scalar_select %p92, %s93, %s94
      %p98 = pneg %p92
      %p99 = scmp.eq.s32.totalorder %s15, 1
      %p100 = por %p98, %p99
      %p101 = scmp.ne.s32.totalorder %s93, %s96
      %p102 = scmp.eq.s32.totalorder %s15, 0
      %p103 = por %p101, %p102
      %p104 = scmp.ne.s32.totalorder %s93, %s96
      %p105 = scmp.eq.s32.totalorder %s20, 1
      %p106 = por %p104, %p105
      %p107 = scmp.ne.s32.totalorder %s96, %s97
      %p108 = scmp.eq.s32.totalorder %s20, 0
      %p109 = por %p107, %p108
      %p110 = scmp.ne.s32.totalorder %s96, %s97
      %p111 = scmp.eq.s32.totalorder %s21, 1
      %p112 = por %p110, %p111
      %p114 = scmp.ne.s32.totalorder %s97, %s113
      %p115 = scmp.eq.s32.totalorder %s21, 0
      %p116 = por %p114, %p115
      %p117 = scmp.le.s32.totalorder 1, %s15
      %p118 = scmp.lt.s32.totalorder %s15, 3
      %p119 = pnand %p117, %p118
      %p120 = pneg %p119
      // Predicated region
      $region9: #{tpu_custom_call.1} parent=5 // pred_check
        _
      $region10: #{tpu_custom_call.1} parent=5 // pred_check_branch
        %122 = sbr.rel (%p119) target = $region12
      $region11: #{tpu_custom_call.1} parent=5 // pred_region
        %s123 = ssub.s32 %s15, 1
        // Predicated region
        $region13: #{tpu_custom_call.1} parent=11 // pred_check
          %p124 = pneg %p62
        $region14: #{tpu_custom_call.1} parent=11 // pred_check_branch
          %126 = sbr.rel (%p124) target = $region16
        $region15: #{tpu_custom_call.1} parent=11 // pred_region
          _
        $region16: #{tpu_custom_call.1} parent=11 // pred_fallthru
          _
        // Predicated region
        $region17: #{tpu_custom_call.1} parent=11 // pred_check
          %p127 = pneg %p83
        $region18: #{tpu_custom_call.1} parent=11 // pred_check_branch
          %129 = sbr.rel (%p127) target = $region20
        $region19: #{tpu_custom_call.1} parent=11 // pred_region
          _
        $region20: #{tpu_custom_call.1} parent=11 // pred_fallthru
          _
      $region12: #{tpu_custom_call.1} parent=5 // pred_fallthru
        _
      %p130 = scmp.lt.s32.totalorder %s15, 2
      // Predicated region
      $region21: #{tpu_custom_call.1} parent=5 // pred_check
        %p131 = pneg %p130
      $region22: #{tpu_custom_call.1} parent=5 // pred_check_branch
        %133 = sbr.rel (%p131) target = $region24
      $region23: #{tpu_custom_call.1} parent=5 // pred_region
        // Predicated region
        $region25: #{tpu_custom_call.1} parent=23 // pred_check
          %p134 = pneg %p35
        $region26: #{tpu_custom_call.1} parent=23 // pred_check_branch
          %136 = sbr.rel (%p134) target = $region28
        $region27: #{tpu_custom_call.1} parent=23 // pred_region
          %s137 = sand.u32 %s25, 1
          %s138 = scalar_lea.sflag [#allocation3], %s137
          %s139 = sand.u32 %s25, 1
          %s140 = smul.addr %s139, 64
          %s141 = scalar_lea.vmem [#allocation2], %s140
          %s143 = ssub.s32 1024, 1024
          %144 = vsyncadd %s138, %s143
          %s145 = smul.addr %s15, 8
          %s146 = smul.addr %s145, 128
          %s147 = scalar_lea.hbm %s0, %s146
          %s148 = sshll.u32 %s141, 4
          %s149 = int_to_ptr.vmem [resolvable:$true] %s148
          %154 = dma.hbm_to_vmem [thread:$0]  %s147, 1024, %s149, %s138, 256, 256, 16
        $region28: #{tpu_custom_call.1} parent=23 // pred_fallthru
          _
      $region24: #{tpu_custom_call.1} parent=5 // pred_fallthru
        _
      %p155 = scmp.le.s32.totalorder 1, %s15
      %p156 = scmp.lt.s32.totalorder %s15, 3
      %p157 = pnand %p155, %p156
      %p158 = pneg %p157
      // Predicated region
      $region29: #{tpu_custom_call.1} parent=5 // pred_check
        _
      $region30: #{tpu_custom_call.1} parent=5 // pred_check_branch
        %160 = sbr.rel (%p157) target = $region32
      $region31: #{tpu_custom_call.1} parent=5 // pred_region
        %s161 = ssub.s32 %s15, 1
        %s162 = sand.u32 %s28, 1
        %s163 = scalar_lea.sflag [#allocation3], %s162
        %s164 = sand.u32 %s28, 1
        %s165 = smul.addr %s164, 64
        %s166 = scalar_lea.vmem [#allocation2], %s165
        // Predicated region
        $region33: #{tpu_custom_call.1} parent=31 // pred_check
          %p167 = pneg %p41
        $region34: #{tpu_custom_call.1} parent=31 // pred_check_branch
          %169 = sbr.rel (%p167) target = $region36
        $region35: #{tpu_custom_call.1} parent=31 // pred_region
          %170 = dma.done %s163, 1024
        $region36: #{tpu_custom_call.1} parent=31 // pred_fallthru
          _
        %s171 = sand.u32 %s28, 1
        %s172 = scalar_lea.sflag [#allocation3], %s171
        %s173 = sand.u32 %s28, 1
        %s174 = smul.addr %s173, 64
        %s175 = scalar_lea.vmem [#allocation2], %s174
        %p176 = pneg %p41
        %p177 = pneg %p38
        %p178 = pneg %p62
        %p179 = pneg %p59
        %p180 = pneg %p83
        %p181 = pneg %p80
        %p182 = pneg %p109
        %p183 = pneg %p106
        %s184 = sand.u32 %s96, 1
        %s185 = scalar_lea.sflag [#allocation4], %s184
        %s186 = sand.u32 %s96, 1
        %s187 = smul.addr %s186, 64
        %s188 = scalar_lea.vmem [#allocation5], %s187
        %v189 = vld [vmem:[%s166] sm:$0xff]
        %v190 = vld [vmem:[%s166 + $0x8] sm:$0xff]
        %v191 = vld [vmem:[%s166 + $0x10] sm:$0xff]
        %v192 = vld [vmem:[%s166 + $0x18] sm:$0xff]
        %v193 = vld [vmem:[%s166 + $0x20] sm:$0xff]
        %v194 = vld [vmem:[%s166 + $0x28] sm:$0xff]
        %v195 = vld [vmem:[%s166 + $0x30] sm:$0xff]
        %v196 = vld [vmem:[%s166 + $0x38] sm:$0xff]
        %v197 = vadd.f32 %v189, %v190
        %198 = vadd.xlane.f32.xlu0 %v197
        %v199 = vpop.xlane.xlu0 %198
        %v200 = vadd.f32 %v191, %v192
        %201 = vadd.xlane.f32.xlu0 %v200
        %v202 = vpop.xlane.xlu0 %201
        %v203 = vadd.f32 %v193, %v194
        %204 = vadd.xlane.f32.xlu0 %v203
        %v205 = vpop.xlane.xlu0 %204
        %v206 = vadd.f32 %v195, %v196
        %207 = vadd.xlane.f32.xlu0 %v206
        %v208 = vpop.xlane.xlu0 %207
        %v209 = vmul.f32 %v199, 0.00390625
        %v210 = vmul.f32 %v202, 0.00390625
        %v211 = vmul.f32 %v205, 0.00390625
        %v212 = vmul.f32 %v208, 0.00390625
        %v213 = vld [vmem:[%s1] sm:$0xff]
        %v214 = vld [vmem:[%s1 + $0x8] sm:$0xff]
        %v215 = vld [vmem:[%s1 + $0x10] sm:$0xff]
        %v216 = vld [vmem:[%s1 + $0x18] sm:$0xff]
        %v217 = vmul.f32 %v213, %v209
        %v218 = vmul.f32 %v214, %v210
        %v219 = vmul.f32 %v215, %v211
        %v220 = vmul.f32 %v216, %v212
        %vm221 = vcmask 15360
        %v222 = vsel %vm221, %v217, 0.0
        %v223 = vsel %vm221, %v218, 0.0
        %v224 = vadd.f32 %v222, %v223
        %v225 = vsel %vm221, %v219, 0.0
        %v226 = vadd.f32 %v224, %v225
        %v227 = vsel %vm221, %v220, 0.0
        %v228 = vadd.f32 %v226, %v227
        %v229 = vrot.slane %v228, 4
        %v230 = vadd.f32 %v228, %v229
        %v231 = vrot.slane %v230, 2
        %v232 = vadd.f32 %v230, %v231
        %v233 = vrot.slane %v232, 1
        %v234 = vadd.f32 %v232, %v233
        %v235 = vmax.f32 %v234, 0.0
        %v236 = vld [vmem:[%s2] sm:$0xff]
        %v237 = vld [vmem:[%s2 + $0x8] sm:$0xff]
        %v238 = vld [vmem:[%s2 + $0x10] sm:$0xff]
        %v239 = vld [vmem:[%s2 + $0x18] sm:$0xff]
        %v240 = vmul.f32 %v236, %v235
        %v241 = vmul.f32 %v237, %v235
        %v242 = vmul.f32 %v238, %v235
        %v243 = vmul.f32 %v239, %v235
        %v244 = vsel %vm221, %v240, 0.0
        %245 = vadd.xlane.f32.xlu0 %v244
        %v246 = vpop.xlane.xlu0 %245
        %v247 = vsel %vm221, %v241, 0.0
        %248 = vadd.xlane.f32.xlu0 %v247
        %v249 = vpop.xlane.xlu0 %248
        %v250 = vsel %vm221, %v242, 0.0
        %251 = vadd.xlane.f32.xlu0 %v250
        %v252 = vpop.xlane.xlu0 %251
        %v253 = vsel %vm221, %v243, 0.0
        %254 = vadd.xlane.f32.xlu0 %v253
        %v255 = vpop.xlane.xlu0 %254
        %v256 = vsub.f32 0.0, %v246
        %v257 = vsub.f32 0.0, %v249
        %v258 = vsub.f32 0.0, %v252
        %v259 = vsub.f32 0.0, %v255
        %v260 = vmul.f32 %v256, 1.442695
        %v261 = vpow.pop %v260
        %v262 = vmul.f32 %v257, 1.442695
        %v263 = vpow.pop %v262
        %v264 = vmul.f32 %v258, 1.442695
        %v265 = vpow.pop %v264
        %v266 = vmul.f32 %v259, 1.442695
        %v267 = vpow.pop %v266
        %v268 = vadd.f32 %v261, 1.0
        %v269 = vadd.f32 %v263, 1.0
        %v270 = vadd.f32 %v265, 1.0
        %v271 = vadd.f32 %v267, 1.0
        %v272 = vrcp.pop %v268
        %v273 = vmul.f32 1.0, %v272
        %v274 = vrcp.pop %v269
        %v275 = vmul.f32 1.0, %v274
        %v276 = vrcp.pop %v270
        %v277 = vmul.f32 1.0, %v276
        %v278 = vrcp.pop %v271
        %v279 = vmul.f32 1.0, %v278
        %v280 = vmul.f32 %v189, %v273
        %v281 = vmul.f32 %v190, %v273
        %v282 = vmul.f32 %v191, %v275
        %v283 = vmul.f32 %v192, %v275
        %v284 = vmul.f32 %v193, %v277
        %v285 = vmul.f32 %v194, %v277
        %v286 = vmul.f32 %v195, %v279
        %v287 = vmul.f32 %v196, %v279
        %288 = vst [vmem:[%s188] sm:$0xff] %v280
        %289 = vst [vmem:[%s188 + $0x8] sm:$0xff] %v281
        %290 = vst [vmem:[%s188 + $0x10] sm:$0xff] %v282
        %291 = vst [vmem:[%s188 + $0x18] sm:$0xff] %v283
        %292 = vst [vmem:[%s188 + $0x20] sm:$0xff] %v284
        %293 = vst [vmem:[%s188 + $0x28] sm:$0xff] %v285
        %294 = vst [vmem:[%s188 + $0x30] sm:$0xff] %v286
        %295 = vst [vmem:[%s188 + $0x38] sm:$0xff] %v287
        %s296 = sand.u32 %s96, 1
        %s297 = scalar_lea.sflag [#allocation4], %s296
        %s298 = sand.u32 %s96, 1
        %s299 = smul.addr %s298, 64
        %s300 = scalar_lea.vmem [#allocation5], %s299
        // Predicated region
        $region37: #{tpu_custom_call.1} parent=31 // pred_check
          %p301 = pneg %p106
        $region38: #{tpu_custom_call.1} parent=31 // pred_check_branch
          %303 = sbr.rel (%p301) target = $region40
        $region39: #{tpu_custom_call.1} parent=31 // pred_region
          %s305 = ssub.s32 1024, 1024
          %306 = vsyncadd %s297, %s305
          %s307 = smul.addr %s20, 8
          %s308 = smul.addr %s307, 128
          %s309 = scalar_lea.hbm %s3, %s308
          %s310 = sshll.u32 %s300, 4
          %s311 = int_to_ptr.vmem [resolvable:$true] %s310
          %316 = dma.vmem_to_hbm [thread:$0]  %s311, 1024, %s309, %s297, 256, 256, 16
        $region40: #{tpu_custom_call.1} parent=31 // pred_fallthru
          _
      $region32: #{tpu_custom_call.1} parent=5 // pred_fallthru
        _
      %p317 = scmp.le.s32.totalorder 2, %s15
      // Predicated region
      $region41: #{tpu_custom_call.1} parent=5 // pred_check
        %p318 = pneg %p317
      $region42: #{tpu_custom_call.1} parent=5 // pred_check_branch
        %320 = sbr.rel (%p318) target = $region44
      $region43: #{tpu_custom_call.1} parent=5 // pred_region
        %s321 = ssub.s32 %s15, 2
        // Predicated region
        $region45: #{tpu_custom_call.1} parent=43 // pred_check
          %p322 = pneg %p112
        $region46: #{tpu_custom_call.1} parent=43 // pred_check_branch
          %324 = sbr.rel (%p322) target = $region48
        $region47: #{tpu_custom_call.1} parent=43 // pred_region
          %s325 = sand.u32 %s97, 1
          %s326 = scalar_lea.sflag [#allocation4], %s325
          %s327 = sand.u32 %s97, 1
          %s328 = smul.addr %s327, 64
          %s329 = scalar_lea.vmem [#allocation5], %s328
          %330 = dma.done %s326, 1024
        $region48: #{tpu_custom_call.1} parent=43 // pred_fallthru
          _
      $region44: #{tpu_custom_call.1} parent=5 // pred_fallthru
        _
    $region6: #{tpu_custom_call.1} parent=1 // loop_footer
      %s19 = sadd.s32 1, %s15
    $region7: #{tpu_custom_call.1} parent=1 // loop_footer_branch
      %14 = sbr.rel target = $region3
    $region8: #{tpu_custom_call.1} parent=1 // loop_exit
      _
    %331 = vsyncpa [#allocation3], 1
    %s332 = scalar_lea.sflag [#allocation3], 1
    %333 = vsyncpa %s332, 1
    %334 = vsyncpa [#allocation4], 1
    %s335 = scalar_lea.sflag [#allocation4], 1
    %336 = vsyncpa %s335, 1

</llo_original>
